<compile_context>
chip_gen: v6e
topology: v6e:2x2x1
jax: 0.10.0
libtpu: 0.0.40
codegen_flags: <defaults>
</compile_context>

<pallas_src>
import functools

import jax
import jax.numpy as jnp
from jax import lax
from jax.experimental import pallas as pl
from jax.experimental.pallas import tpu as pltpu


def _make_kernel(n_actual, tn, gamma, alpha, reduction):
    """Builds the kernel with static (python) config baked in."""

    def kernel(logits_ref, targets_ref, out_ref, acc_ref):
        i = pl.program_id(0)

        # (C, TN) tile; upcast once (bf16 storage on v6e/v7x/v5e is fine, math in f32).
        logits = logits_ref[...].astype(jnp.float32)
        tgt = targets_ref[...]                       # (1, TN) int32
        c = logits.shape[0]

        # Mask out padding columns (global column index >= real batch size).
        col = lax.broadcasted_iota(jnp.int32, (1, tn), 1) + i * tn
        valid = col < n_actual

        # ---- numerically stable log-softmax over the class (sublane) axis ----
        row_max = jnp.max(logits, axis=0, keepdims=True)          # (1, TN)
        shifted = logits - row_max                                 # (C, TN)
        exps = jnp.exp(shifted)                                    # (C, TN)
        sum_exp = jnp.sum(exps, axis=0, keepdims=True)             # (1, TN)

        # Gather the target class via a one-hot sublane mask (no dynamic gather).
        cls = lax.broadcasted_iota(jnp.int32, (c, tn), 0)          # (C, TN)
        onehot = cls == tgt                                        # (C, TN) bool
        picked = jnp.sum(jnp.where(onehot, shifted, 0.0),
                         axis=0, keepdims=True)                    # (1, TN)
        exp_picked = jnp.sum(jnp.where(onehot, exps, 0.0),
                             axis=0, keepdims=True)                # (1, TN)

        ce = jnp.log(sum_exp) - picked                             # (1, TN) = -log p_t

        # pt without a second exp: pt = exp(picked) / sum_exp, reusing exps.
        pt = exp_picked * pl.reciprocal(sum_exp, approx=True)      # (1, TN)
        one_minus_pt = jnp.maximum(1.0 - pt, 0.0)                  # clamp ulp overshoot

        if float(gamma) == 2.0:
            w = one_minus_pt * one_minus_pt                        # VPU multiply, no pow
        elif float(gamma) == int(gamma):
            w = lax.integer_pow(one_minus_pt, int(gamma))
        else:
            w = one_minus_pt ** jnp.float32(gamma)

        focal = w * ce
        if alpha is not None:
            focal = jnp.float32(alpha) * focal
        focal = jnp.where(valid, focal, 0.0)                       # zero padding lanes

        if reduction == "none":
            out_ref[...] = focal.astype(out_ref.dtype)             # lane-dense (1, TN)
        else:
            @pl.when(i == 0)
            def _():
                acc_ref[0] = jnp.float32(0.0)

            acc_ref[0] += jnp.sum(focal)

            @pl.when(i == pl.num_programs(0) - 1)
            def _():
                total = acc_ref[0]
                if reduction == "mean":
                    total = total / jnp.float32(n_actual)
                out_ref[0] = total

    return kernel


def focal_loss(logits, targets, *, gamma=2.0, alpha=None, reduction="mean",
               block_n=512):
    """logits: (N, C) f32/bf16, targets: (N,) int -> scalar (mean/sum) or (N,) (none)."""
    n, c = logits.shape

    # Lane-dense batch tiling: TN is a multiple of 128, batch padded to TN multiple.
    n_lane = pl.cdiv(n, 128) * 128
    tn = min(pl.cdiv(block_n, 128) * 128, n_lane)
    n_pad = pl.cdiv(n, tn) * tn
    grid_n = n_pad // tn

    # Transpose + pad: classes on sublanes, batch on lanes.
    logits_t = jnp.zeros((c, n_pad), logits.dtype).at[:, :n].set(logits.T)
    tgt = jnp.zeros((1, n_pad), jnp.int32).at[0, :n].set(targets.astype(jnp.int32))

    kernel = _make_kernel(n, tn, gamma, alpha, reduction)

    if reduction == "none":
        out_shape = jax.ShapeDtypeStruct((1, n_pad), jnp.float32)
        out_spec = pl.BlockSpec((1, tn), lambda i: (0, i))
        semantics = ("parallel",)
    else:
        out_shape = jax.ShapeDtypeStruct((1,), jnp.float32)
        out_spec = pl.BlockSpec(memory_space=pltpu.SMEM)
        semantics = ("arbitrary",)        # reduction over the batch-tile axis

    out = pl.pallas_call(
        kernel,
        out_shape=out_shape,
        grid_spec=pltpu.PrefetchScalarGridSpec(
            num_scalar_prefetch=0,
            grid=(grid_n,),
            in_specs=[
                pl.BlockSpec((c, tn), lambda i: (0, i)),   # logits tile (C, TN)
                pl.BlockSpec((1, tn), lambda i: (0, i)),   # lane-dense targets row
            ],
            out_specs=out_spec,
            scratch_shapes=[pltpu.SMEM((1,), jnp.float32)],  # running sum
        ),
        compiler_params=pltpu.CompilerParams(
            dimension_semantics=semantics,
            vmem_limit_bytes=32 * 1024 * 1024,
        ),
    )(logits_t, tgt)

    if reduction == "none":
        return out[0, :n]
    return out[0]


def _reference_focal_loss(logits, targets, gamma=2.0, reduction="mean"):
    # Pure-JAX reference of the PyTorch forward.
    logp = jax.nn.log_softmax(logits.astype(jnp.float32), axis=-1)
    ce = -jnp.take_along_axis(logp, targets[:, None].astype(jnp.int32), axis=-1)[:, 0]
    pt = jnp.exp(-ce)
    fl = (1.0 - pt) ** gamma * ce
    if reduction == "mean":
        return fl.mean()
    if reduction == "sum":
        return fl.sum()
    return fl


if __name__ == "__main__":
    key = jax.random.PRNGKey(0)
    k1, k2, k3, k4 = jax.random.split(key, 4)

    # Small shapes consistent with the module: batch=16 samples, 8 classes.
    N, C = 16, 8
    logits = jax.random.normal(k1, (N, C), dtype=jnp.float32)
    targets = jax.random.randint(k2, (N,), 0, C, dtype=jnp.int32)

    # Default reduction='mean' (module default).  Tolerance accounts for the
    # approx EUP reciprocal used for pt.
    loss = jax.block_until_ready(focal_loss(logits, targets))
    ref = _reference_focal_loss(logits, targets)
    assert jnp.allclose(loss, ref, rtol=2e-3, atol=2e-3), (loss, ref)

    # 'none' reduction path (lane-dense per-sample output).
    fl_none = jax.block_until_ready(focal_loss(logits, targets, reduction="none"))
    ref_none = _reference_focal_loss(logits, targets, reduction="none")
    assert jnp.allclose(fl_none, ref_none, rtol=2e-3, atol=2e-3), (fl_none, ref_none)

    # Multi-tile accumulator path: N not a multiple of the lane tile, grid > 1.
    N2 = 300
    logits2 = jax.random.normal(k3, (N2, C), dtype=jnp.float32)
    targets2 = jax.random.randint(k4, (N2,), 0, C, dtype=jnp.int32)
    loss2 = jax.block_until_ready(focal_loss(logits2, targets2, block_n=128))
    ref2 = _reference_focal_loss(logits2, targets2)
    assert jnp.allclose(loss2, ref2, rtol=2e-3, atol=2e-3), (loss2, ref2)

    print("KERNEL_OK")
</pallas_src>

<mosaic_0001>
module attributes {stable_mosaic.version = 11 : i64} {
  func.func @kernel(%arg0: i32, %arg1: memref<8x128xf32, #tpu.memory_space<vmem>>, %arg2: memref<1x128xi32, #tpu.memory_space<vmem>>, %arg3: memref<1xf32, #tpu.memory_space<smem>>, %arg4: memref<1xf32, #tpu.memory_space<smem>>) attributes {dimension_semantics = [#tpu.dimension_semantics<arbitrary>], iteration_bounds = array<i64: 1>, scalar_prefetch = 0 : i64, scratch_operands = 1 : i64, tpu.core_type = #tpu.core_type<tc>, window_params = [{transform_indices = @transform_0, window_bounds = array<i64: 8, 128>}, {transform_indices = @transform_1, window_bounds = array<i64: 1, 128>}, {transform_indices = @transform_2, window_bounds = array<i64: 1>}]} {
    %c0 = arith.constant 0 : index
    %c0_0 = arith.constant 0 : index
    %0 = vector.load %arg1[%c0, %c0_0] : memref<8x128xf32, #tpu.memory_space<vmem>>, vector<8x128xf32>
    %c0_1 = arith.constant 0 : index
    %c0_2 = arith.constant 0 : index
    %1 = vector.load %arg2[%c0_1, %c0_2] : memref<1x128xi32, #tpu.memory_space<vmem>>, vector<1x128xi32>
    %2 = tpu.iota {dimensions = array<i32: 1>} : vector<1x128xi32>
    %c128_i32 = arith.constant 128 : i32
    %3 = arith.muli %arg0, %c128_i32 : i32
    %4 = vector.broadcast %3 : i32 to vector<1x128xi32>
    %5 = arith.addi %2, %4 : vector<1x128xi32>
    %c16_i32 = arith.constant 16 : i32
    %6 = vector.broadcast %c16_i32 : i32 to vector<1x128xi32>
    %7 = arith.cmpi slt, %5, %6 : vector<1x128xi32>
    %cst = arith.constant dense<0xFF800000> : vector<128xf32>
    %8 = vector.multi_reduction <maximumf>, %0, %cst [0] : vector<8x128xf32> to vector<128xf32>
    %9 = vector.shape_cast %8 : vector<128xf32> to vector<1x128xf32>
    %10 = vector.broadcast %9 : vector<1x128xf32> to vector<8x128xf32>
    %11 = arith.subf %0, %10 : vector<8x128xf32>
    %12 = math.exp %11 : vector<8x128xf32>
    %cst_3 = arith.constant dense<0.000000e+00> : vector<128xf32>
    %13 = vector.multi_reduction <add>, %12, %cst_3 [0] : vector<8x128xf32> to vector<128xf32>
    %14 = vector.shape_cast %13 : vector<128xf32> to vector<1x128xf32>
    %15 = tpu.iota {dimensions = array<i32: 0>} : vector<8x128xi32>
    %16 = vector.broadcast %1 : vector<1x128xi32> to vector<8x128xi32>
    %17 = arith.cmpi eq, %15, %16 : vector<8x128xi32>
    %cst_4 = arith.constant 0.000000e+00 : f32
    %18 = vector.broadcast %cst_4 : f32 to vector<8x128xf32>
    %19 = arith.select %17, %11, %18 : vector<8x128xi1>, vector<8x128xf32>
    %cst_5 = arith.constant dense<0.000000e+00> : vector<128xf32>
    %20 = vector.multi_reduction <add>, %19, %cst_5 [0] : vector<8x128xf32> to vector<128xf32>
    %21 = vector.shape_cast %20 : vector<128xf32> to vector<1x128xf32>
    %cst_6 = arith.constant 0.000000e+00 : f32
    %22 = vector.broadcast %cst_6 : f32 to vector<8x128xf32>
    %23 = arith.select %17, %12, %22 : vector<8x128xi1>, vector<8x128xf32>
    %cst_7 = arith.constant dense<0.000000e+00> : vector<128xf32>
    %24 = vector.multi_reduction <add>, %23, %cst_7 [0] : vector<8x128xf32> to vector<128xf32>
    %25 = vector.shape_cast %24 : vector<128xf32> to vector<1x128xf32>
    %26 = math.log %14 : vector<1x128xf32>
    %27 = arith.subf %26, %21 : vector<1x128xf32>
    %28 = tpu.reciprocal %14 {approx = true} : vector<1x128xf32> -> vector<1x128xf32>
    %29 = arith.mulf %25, %28 : vector<1x128xf32>
    %cst_8 = arith.constant 1.000000e+00 : f32
    %30 = vector.broadcast %cst_8 : f32 to vector<1x128xf32>
    %31 = arith.subf %30, %29 : vector<1x128xf32>
    %cst_9 = arith.constant 0.000000e+00 : f32
    %32 = vector.broadcast %cst_9 : f32 to vector<1x128xf32>
    %33 = arith.maximumf %31, %32 : vector<1x128xf32>
    %34 = arith.mulf %33, %33 : vector<1x128xf32>
    %35 = arith.mulf %34, %27 : vector<1x128xf32>
    %cst_10 = arith.constant 0.000000e+00 : f32
    %36 = vector.broadcast %cst_10 : f32 to vector<1x128xf32>
    %37 = arith.select %7, %35, %36 : vector<1x128xi1>, vector<1x128xf32>
    %c0_i32 = arith.constant 0 : i32
    %38 = arith.cmpi eq, %arg0, %c0_i32 : i32
    %39 = arith.extui %38 : i1 to i32
    %c0_i32_11 = arith.constant 0 : i32
    %40 = arith.cmpi ne, %39, %c0_i32_11 : i32
    scf.if %40 {
      %cst_17 = arith.constant 0.000000e+00 : f32
      %c0_18 = arith.constant 0 : index
      %51 = memref.load %arg4[%c0_18] : memref<1xf32, #tpu.memory_space<smem>>
      memref.store %cst_17, %arg4[%c0_18] : memref<1xf32, #tpu.memory_space<smem>>
    } else {
    }
    %c0_12 = arith.constant 0 : index
    %41 = memref.load %arg4[%c0_12] : memref<1xf32, #tpu.memory_space<smem>>
    %42 = vector.shape_cast %37 : vector<1x128xf32> to vector<1x1x128xf32>
    %cst_13 = arith.constant dense<0.000000e+00> : vector<1xf32>
    %43 = vector.multi_reduction <add>, %42, %cst_13 [1, 2] : vector<1x1x128xf32> to vector<1xf32>
    %44 = vector.shape_cast %43 : vector<1xf32> to vector<1x1x1xf32>
    %45 = vector.extract %44[0, 0, 0] : f32 from vector<1x1x1xf32>
    %46 = arith.addf %41, %45 : f32
    %c0_14 = arith.constant 0 : index
    %47 = memref.load %arg4[%c0_14] : memref<1xf32, #tpu.memory_space<smem>>
    memref.store %46, %arg4[%c0_14] : memref<1xf32, #tpu.memory_space<smem>>
    %c0_i32_15 = arith.constant 0 : i32
    %48 = arith.cmpi eq, %arg0, %c0_i32_15 : i32
    %49 = arith.extui %48 : i1 to i32
    %c0_i32_16 = arith.constant 0 : i32
    %50 = arith.cmpi ne, %49, %c0_i32_16 : i32
    scf.if %50 {
      %c0_17 = arith.constant 0 : index
      %51 = memref.load %arg4[%c0_17] : memref<1xf32, #tpu.memory_space<smem>>
      %cst_18 = arith.constant 1.600000e+01 : f32
      %52 = arith.divf %51, %cst_18 : f32
      %c0_19 = arith.constant 0 : index
      %53 = memref.load %arg3[%c0_19] : memref<1xf32, #tpu.memory_space<smem>>
      memref.store %52, %arg3[%c0_19] : memref<1xf32, #tpu.memory_space<smem>>
    } else {
    }
    return
  }
  func.func @transform_0(%arg0: i32) -> (i32, i32) {
    %c0_i32 = arith.constant 0 : i32
    %c0_i32_0 = arith.constant 0 : i32
    return %c0_i32, %arg0 : i32, i32
  }
  func.func @transform_1(%arg0: i32) -> (i32, i32) {
    %c0_i32 = arith.constant 0 : i32
    %c0_i32_0 = arith.constant 0 : i32
    return %c0_i32, %arg0 : i32, i32
  }
  func.func @transform_2(%arg0: i32) -> i32 {
    %c0_i32 = arith.constant 0 : i32
    %c0_i32_0 = arith.constant 0 : i32
    return %c0_i32 : i32
  }
}

</mosaic_0001>

<llo_original>
// kernel: tpu_custom_call.1
$region0: #{tpu_custom_call.1}
  #allocation0 [shape = 'u32[]', space=smem, size = 0x4, offset = 0x4, fixed_abs, tag = 'smem constant byte address 0x4 - core index']
  #allocation1 [shape = 'u32[144,128]{1,0:T(1,128)}', space=vmem, size = 0x12000, scoped, tag = 'internal scratch']
  #allocation2 [shape = 'f32[1]{0:T(128)}', space=smem, size = 0x200, scoped, tag = 'scratch operand']
  %s0 = inlined_call_operand.hbm [shape: f32[8,128], index: 0, kind: input, shape index: {}]
  %s1 = inlined_call_operand.vmem [shape: s32[1,128], index: 1, kind: input, shape index: {}]
  %s2 = inlined_call_operand.hbm [shape: f32[1], index: 2, kind: output, shape index: {}]
  %s3 = sld [smem:[#allocation0]]
  $region30: #{tpu_custom_call.1} parent=0
    _
  %s5 = ssub.s32 1, %s3
  %s6 = scalar_select 0, %s5, %s3
  $region1: #{tpu_custom_call.1} parent=0
    #allocation3 [shape = 'u8[4096]{0}', space=vmem, size = 0x1000, scoped, tag = 'input window, operand 0, single buffered']
    #allocation4 [shape = 's32[1]{0}', space=sflag, size = 0x4, scoped, tag = 'scoped memory for tpu_custom_call.1']
    #allocation5 [shape = 's32[1]{0}', space=sflag, size = 0x4, scoped, tag = 'scoped memory for tpu_custom_call.1']
    #allocation6 [shape = 'u8[512]{0}', space=smem, size = 0x200, scoped, tag = 'output window, operand 0, single buffered']
    %7 = vsyncpa [#allocation4], 0
    %8 = vsyncpa [#allocation5], 0
    // Predicated region
    $region2: #{tpu_custom_call.1} parent=1 // pred_check
      _
    $region3: #{tpu_custom_call.1} parent=1 // pred_check_branch
      %10 = sbr.rel (0) target = $region5
    $region4: #{tpu_custom_call.1} parent=1 // pred_region
      %s12 = ssub.s32 128, 128
      %13 = vsyncadd [#allocation4], %s12
      %s15 = sshll.u32 [#allocation3], 4
      %s16 = int_to_ptr.vmem [resolvable:$true] %s15
      %18 = dma.hbm_to_vmem [thread:$0]  %s0, 128, %s16, [#allocation4]
    $region5: #{tpu_custom_call.1} parent=1 // pred_fallthru
      _
    // Predicated region
    $region6: #{tpu_custom_call.1} parent=1 // pred_check
      _
    $region7: #{tpu_custom_call.1} parent=1 // pred_check_branch
      %20 = sbr.rel (0) target = $region9
    $region8: #{tpu_custom_call.1} parent=1 // pred_region
      _
    $region9: #{tpu_custom_call.1} parent=1 // pred_fallthru
      _
    // Predicated region
    $region10: #{tpu_custom_call.1} parent=1 // pred_check
      _
    $region11: #{tpu_custom_call.1} parent=1 // pred_check_branch
      %22 = sbr.rel (0) target = $region13
    $region12: #{tpu_custom_call.1} parent=1 // pred_region
      %23 = dma.done [#allocation4], 128
    $region13: #{tpu_custom_call.1} parent=1 // pred_fallthru
      _
    %v24 = vld [vmem:[#allocation3] sm:$0xff]
    %v25 = vld [vmem:[%s1] sm:$0x1]
    %v26 = vlaneseq
    %v27 = vand.u32 %v26, 127
    %s28 = smul.u32 0, 128
    %v29 = vstv %s28
    %v30 = vadd.s32 %v27, %v29
    %vm31 = vcmp.lt.s32.totalorder %v30, 16
    %v32 = vrot.slane %v24, 4
    %v33 = vmax.f32 %v24, %v32
    %v34 = vrot.slane %v33, 2
    %v35 = vmax.f32 %v33, %v34
    %v36 = vrot.slane %v35, 1
    %v37 = vmax.f32 %v35, %v36
    %v38 = vsub.f32 %v24, %v37
    %v39 = vmul.f32 %v38, 1.442695
    %v40 = vpow.pop %v39
    %v41 = vrot.slane %v40, 4
    %v42 = vadd.f32 %v40, %v41
    %v43 = vrot.slane %v42, 2
    %v44 = vadd.f32 %v42, %v43
    %v45 = vrot.slane %v44, 1
    %v46 = vadd.f32 %v44, %v45
    %v47 = vlaneseq
    %v48 = vshrl.u32 %v47, 7
    %v49 = vlaneseq
    %v50 = vshrl.u32 %v49, 7
    %v51 = vsub.s32 0, %v50
    %v52 = vrot.slane %v25, %v51
    %vm53 = vcmp.eq.s32.totalorder %v48, %v52
    %v54 = vsel %vm53, %v38, 0.0
    %v55 = vrot.slane %v54, 4
    %v56 = vadd.f32 %v54, %v55
    %v57 = vrot.slane %v56, 2
    %v58 = vadd.f32 %v56, %v57
    %v59 = vrot.slane %v58, 1
    %v60 = vadd.f32 %v58, %v59
    %v61 = vsel %vm53, %v40, 0.0
    %v62 = vrot.slane %v61, 4
    %v63 = vadd.f32 %v61, %v62
    %v64 = vrot.slane %v63, 2
    %v65 = vadd.f32 %v63, %v64
    %v66 = vrot.slane %v65, 1
    %v67 = vadd.f32 %v65, %v66
    %v68 = vlog2.pop %v46
    %v69 = vmul.f32 %v68, 0.6931472
    %v70 = vsub.f32 %v69, %v60
    %v71 = vrcp.pop %v46
    %v72 = vmul.f32 %v67, %v71
    %v73 = vsub.f32 1.0, %v72
    %v74 = vmax.f32 %v73, 0.0
    %v75 = vmul.f32 %v74, %v74
    %v76 = vmul.f32 %v75, %v70
    %v77 = vsel %vm31, %v76, 0.0
    %p78 = scmp.eq.s32.totalorder 0, 0
    // Predicated region
    $region14: #{tpu_custom_call.1} parent=1 // pred_check
      %p79 = pneg %p78
    $region15: #{tpu_custom_call.1} parent=1 // pred_check_branch
      %81 = sbr.rel (%p79) target = $region17
    $region16: #{tpu_custom_call.1} parent=1 // pred_region
      %s82 = scalar_lea.smem [#allocation2], 0
      %83 = sst [smem:[%s82]] 0.0
    $region17: #{tpu_custom_call.1} parent=1 // pred_fallthru
      _
    %s84 = sld [smem:[#allocation2]]
    %vm85 = vcmask 1040384
    %v86 = vsel %vm85, %v77, 0.0
    %87 = vadd.xlane.f32.xlu0 %v86
    %v88 = vpop.xlane.xlu0 %87
    %v89 = vrot.slane %v88, 4
    %v90 = vadd.f32 %v88, %v89
    %v91 = vrot.slane %v90, 2
    %v92 = vadd.f32 %v90, %v91
    %v93 = vrot.slane %v92, 1
    %v94 = vadd.f32 %v92, %v93
    %s95 = vtos %v94
    %s96 = sadd.f32 %s84, %s95
    %s97 = scalar_lea.smem [#allocation2], 0
    %98 = sst [smem:[%s97]] %s96
    // Predicated region
    $region18: #{tpu_custom_call.1} parent=1 // pred_check
      %p99 = pneg %p78
    $region19: #{tpu_custom_call.1} parent=1 // pred_check_branch
      %101 = sbr.rel (%p99) target = $region21
    $region20: #{tpu_custom_call.1} parent=1 // pred_region
      %s102 = sld [smem:[#allocation2]]
      %v103 = vrcp.pop 16.0
      %s104 = vtos %v103
      %s105 = smul.f32 %s102, %s104
      %s106 = scalar_lea.smem [#allocation6], 0
      %107 = sst [smem:[%s106]] %s105
    $region21: #{tpu_custom_call.1} parent=1 // pred_fallthru
      _
    // Predicated region
    $region22: #{tpu_custom_call.1} parent=1 // pred_check
      _
    $region23: #{tpu_custom_call.1} parent=1 // pred_check_branch
      %109 = sbr.rel (0) target = $region25
    $region24: #{tpu_custom_call.1} parent=1 // pred_region
      %s111 = ssub.s32 16, 16
      %112 = vsyncadd [#allocation5], %s111
      %115 = dma.smem_to_hbm [#allocation6], 16, %s2, [#allocation5]
    $region25: #{tpu_custom_call.1} parent=1 // pred_fallthru
      _
    // Predicated region
    $region26: #{tpu_custom_call.1} parent=1 // pred_check
      _
    $region27: #{tpu_custom_call.1} parent=1 // pred_check_branch
      %117 = sbr.rel (0) target = $region29
    $region28: #{tpu_custom_call.1} parent=1 // pred_region
      %118 = dma.done [#allocation5], 16
    $region29: #{tpu_custom_call.1} parent=1 // pred_fallthru
      _
    %119 = sfence
    %120 = vsyncpa [#allocation4], 1
    %121 = vsyncpa [#allocation5], 1

</llo_original>
